<compile_context>
chip_gen: v7x
topology: tpu7x:2x2x1
jax: 0.10.0
libtpu: 0.0.40
codegen_flags: <defaults>
</compile_context>

<pallas_src>
import jax
import jax.numpy as jnp
from jax.experimental import pallas as pl
from jax.experimental.pallas import tpu as pltpu


def policy_kernel(state_ref, w1_ref, b1_ref, w2_ref, b2_ref,
                  gamma_ref, beta_ref, embt_ref, out_ref):
    # fc1 + relu (bf16 operands, f32 accumulation on the MXU)
    x = jnp.dot(state_ref[...], w1_ref[...], preferred_element_type=jnp.float32)
    x = jnp.maximum(x + b1_ref[...], 0.0)

    # fc2 (cast activation to bf16 for the MXU, accumulate in f32)
    latent = jnp.dot(x.astype(jnp.bfloat16), w2_ref[...],
                     preferred_element_type=jnp.float32)
    latent = latent + b2_ref[...]

    # LayerNorm over last dim, eps = 1e-5 (torch default), single-pass stats,
    # all math in f32.
    d = latent.shape[-1]
    s = jnp.sum(latent, axis=-1, keepdims=True)
    s2 = jnp.sum(latent * latent, axis=-1, keepdims=True)
    mean = s * (1.0 / d)
    var = s2 * (1.0 / d) - mean * mean
    normed = (latent - mean) * jax.lax.rsqrt(var + 1e-5)
    normed = normed * gamma_ref[...] + beta_ref[...]

    # logits tile: [batch, latent] @ [latent, TV]  (embeddings pre-transposed,
    # so no in-kernel transpose and the output last dim is lane-dense).
    out_ref[...] = jnp.dot(normed.astype(jnp.bfloat16), embt_ref[...],
                           preferred_element_type=jnp.float32)


def policy_forward(state, w1, b1, w2, b2, gamma, beta, word_embeddings, *, tv=256):
    """state: [B, S]; w1: [S, 128]; w2: [128, L]; word_embeddings: [V, L].

    Weights are stored as [in, out] (transpose of nn.Linear's [out, in]).
    Returns logits [B, V] in float32.
    """
    batch, state_dim = state.shape
    hidden = w1.shape[1]
    vocab, latent_dim = word_embeddings.shape

    # bf16 for the big matmul operands; biases / LN params stay f32.
    state_bf = state.astype(jnp.bfloat16)
    w1_bf = w1.astype(jnp.bfloat16)
    w2_bf = w2.astype(jnp.bfloat16)

    # Pre-transpose embeddings to [latent_dim, vocab] and pad vocab up to a
    # multiple of the (lane-aligned) tile so every store is an unmasked vst.
    tv = min(tv, pl.cdiv(vocab, 128) * 128)
    padded_vocab = pl.cdiv(vocab, tv) * tv
    emb_t = word_embeddings.T.astype(jnp.bfloat16)
    if padded_vocab != vocab:
        emb_t = jnp.pad(emb_t, ((0, 0), (0, padded_vocab - vocab)))

    grid = (padded_vocab // tv,)

    flops = 2 * batch * (state_dim * hidden
                         + hidden * latent_dim
                         + latent_dim * padded_vocab)
    bytes_accessed = (state_bf.size * 2 + w1_bf.size * 2 + w2_bf.size * 2
                      + emb_t.size * 2
                      + (b1.size + b2.size + gamma.size + beta.size) * 4
                      + batch * padded_vocab * 4)

    # Small operands use a constant index_map (block 0 stays resident across
    # the grid); only the embedding tile and the output tile move with `v`.
    const2d = lambda v: (0, 0)
    out = pl.pallas_call(
        policy_kernel,
        out_shape=jax.ShapeDtypeStruct((batch, padded_vocab), jnp.float32),
        grid=grid,
        in_specs=[
            pl.BlockSpec((batch, state_dim), const2d),      # state
            pl.BlockSpec((state_dim, hidden), const2d),     # w1
            pl.BlockSpec((1, hidden), const2d),             # b1
            pl.BlockSpec((hidden, latent_dim), const2d),    # w2
            pl.BlockSpec((1, latent_dim), const2d),         # b2
            pl.BlockSpec((1, latent_dim), const2d),         # gamma
            pl.BlockSpec((1, latent_dim), const2d),         # beta
            pl.BlockSpec((latent_dim, tv), lambda v: (0, v)),  # emb^T tile
        ],
        out_specs=pl.BlockSpec((batch, tv), lambda v: (0, v)),
        compiler_params=pltpu.CompilerParams(
            dimension_semantics=("parallel",)),
        cost_estimate=pl.CostEstimate(
            flops=flops, transcendentals=batch, bytes_accessed=bytes_accessed),
    )(state_bf, w1_bf, b1, w2_bf, b2, gamma, beta, emb_t)

    return out[:, :vocab]


def reference_forward(state, w1, b1, w2, b2, gamma, beta, word_embeddings):
    # Mirrors the kernel's precision policy: bf16 matmul operands, f32 accum,
    # f32 LayerNorm.
    x = jnp.dot(state.astype(jnp.bfloat16), w1.astype(jnp.bfloat16),
                preferred_element_type=jnp.float32)
    x = jnp.maximum(x + b1, 0.0)
    latent = jnp.dot(x.astype(jnp.bfloat16), w2.astype(jnp.bfloat16),
                     preferred_element_type=jnp.float32) + b2
    mean = jnp.mean(latent, axis=-1, keepdims=True)
    var = jnp.mean((latent - mean) ** 2, axis=-1, keepdims=True)
    normed = (latent - mean) / jnp.sqrt(var + 1e-5)
    normed = normed * gamma + beta
    return jnp.dot(normed.astype(jnp.bfloat16),
                   word_embeddings.T.astype(jnp.bfloat16),
                   preferred_element_type=jnp.float32)


if __name__ == "__main__":
    # Small, TPU-friendly shapes consistent with the module.
    batch = 8
    state_dim = 32
    hidden = 128          # fixed by the module (fc1 out)
    latent_dim = 32
    vocab = 512           # candidate words (rows of word_embeddings); 256-aligned

    key = jax.random.PRNGKey(0)
    k_state, k_w1, k_b1, k_w2, k_b2, k_emb = jax.random.split(key, 6)

    state = jax.random.normal(k_state, (batch, state_dim), dtype=jnp.float32)

    # Deterministic parameter init (synthetic; roughly Kaiming-uniform scale).
    w1 = jax.random.normal(k_w1, (state_dim, hidden), jnp.float32) * (1.0 / jnp.sqrt(state_dim))
    b1 = jax.random.normal(k_b1, (1, hidden), jnp.float32) * 0.01
    w2 = jax.random.normal(k_w2, (hidden, latent_dim), jnp.float32) * (1.0 / jnp.sqrt(hidden))
    b2 = jax.random.normal(k_b2, (1, latent_dim), jnp.float32) * 0.01
    gamma = jnp.ones((1, latent_dim), jnp.float32)   # LayerNorm weight init = 1
    beta = jnp.zeros((1, latent_dim), jnp.float32)   # LayerNorm bias init = 0
    word_embeddings = jax.random.normal(k_emb, (vocab, latent_dim), jnp.float32)

    logits = policy_forward(state, w1, b1, w2, b2, gamma, beta, word_embeddings)
    logits = jax.block_until_ready(logits)

    ref = reference_forward(state, w1, b1, w2, b2, gamma, beta, word_embeddings)
    assert logits.shape == (batch, vocab)
    assert jnp.allclose(logits, ref, atol=1e-2, rtol=1e-2), (
        float(jnp.max(jnp.abs(logits - ref))))

    print("KERNEL_OK")
</pallas_src>

<mosaic_0001>
module attributes {stable_mosaic.version = 11 : i64} {
  func.func @policy_kernel(%arg0: i32, %arg1: memref<8x32xbf16, #tpu.memory_space<vmem>>, %arg2: memref<32x128xbf16, #tpu.memory_space<vmem>>, %arg3: memref<1x128xf32, #tpu.memory_space<vmem>>, %arg4: memref<128x32xbf16, #tpu.memory_space<vmem>>, %arg5: memref<1x32xf32, #tpu.memory_space<vmem>>, %arg6: memref<1x32xf32, #tpu.memory_space<vmem>>, %arg7: memref<1x32xf32, #tpu.memory_space<vmem>>, %arg8: memref<32x256xbf16, #tpu.memory_space<vmem>>, %arg9: memref<8x256xf32, #tpu.memory_space<vmem>>) attributes {dimension_semantics = [#tpu.dimension_semantics<parallel>], iteration_bounds = array<i64: 2>, scalar_prefetch = 0 : i64, scratch_operands = 0 : i64, tpu.core_type = #tpu.core_type<tc>, window_params = [{pipeline_mode = #tpu.pipeline_mode<synchronous>, transform_indices = @transform_0, window_bounds = array<i64: 8, 32>}, {pipeline_mode = #tpu.pipeline_mode<synchronous>, transform_indices = @transform_1, window_bounds = array<i64: 32, 128>}, {pipeline_mode = #tpu.pipeline_mode<synchronous>, transform_indices = @transform_2, window_bounds = array<i64: 1, 128>}, {pipeline_mode = #tpu.pipeline_mode<synchronous>, transform_indices = @transform_3, window_bounds = array<i64: 128, 32>}, {pipeline_mode = #tpu.pipeline_mode<synchronous>, transform_indices = @transform_4, window_bounds = array<i64: 1, 32>}, {pipeline_mode = #tpu.pipeline_mode<synchronous>, transform_indices = @transform_5, window_bounds = array<i64: 1, 32>}, {pipeline_mode = #tpu.pipeline_mode<synchronous>, transform_indices = @transform_6, window_bounds = array<i64: 1, 32>}, {transform_indices = @transform_7, window_bounds = array<i64: 32, 256>}, {transform_indices = @transform_8, window_bounds = array<i64: 8, 256>}]} {
    %c0 = arith.constant 0 : index
    %c0_0 = arith.constant 0 : index
    %0 = vector.load %arg1[%c0, %c0_0] : memref<8x32xbf16, #tpu.memory_space<vmem>>, vector<8x32xbf16>
    %c0_1 = arith.constant 0 : index
    %c0_2 = arith.constant 0 : index
    %1 = vector.load %arg2[%c0_1, %c0_2] : memref<32x128xbf16, #tpu.memory_space<vmem>>, vector<32x128xbf16>
    %cst = arith.constant dense<0.000000e+00> : vector<8x128xf32>
    %2 = tpu.matmul %0, %1, %cst {dimension_numbers = #tpu.dot_dimension_numbers<[1], [0], [0], [1], [0, 0, 1, 1], [], []>} : vector<8x32xbf16>, vector<32x128xbf16>, vector<8x128xf32> -> vector<8x128xf32>
    %c0_3 = arith.constant 0 : index
    %c0_4 = arith.constant 0 : index
    %3 = vector.load %arg3[%c0_3, %c0_4] : memref<1x128xf32, #tpu.memory_space<vmem>>, vector<1x128xf32>
    %4 = vector.broadcast %3 : vector<1x128xf32> to vector<8x128xf32>
    %5 = arith.addf %2, %4 : vector<8x128xf32>
    %cst_5 = arith.constant 0.000000e+00 : f32
    %6 = vector.broadcast %cst_5 : f32 to vector<8x128xf32>
    %7 = arith.maximumf %5, %6 : vector<8x128xf32>
    %8 = arith.truncf %7 : vector<8x128xf32> to vector<8x128xbf16>
    %c0_6 = arith.constant 0 : index
    %c0_7 = arith.constant 0 : index
    %9 = vector.load %arg4[%c0_6, %c0_7] : memref<128x32xbf16, #tpu.memory_space<vmem>>, vector<128x32xbf16>
    %cst_8 = arith.constant dense<0.000000e+00> : vector<8x32xf32>
    %10 = tpu.matmul %8, %9, %cst_8 {dimension_numbers = #tpu.dot_dimension_numbers<[1], [0], [0], [1], [0, 0, 1, 1], [], []>} : vector<8x128xbf16>, vector<128x32xbf16>, vector<8x32xf32> -> vector<8x32xf32>
    %c0_9 = arith.constant 0 : index
    %c0_10 = arith.constant 0 : index
    %11 = vector.load %arg5[%c0_9, %c0_10] : memref<1x32xf32, #tpu.memory_space<vmem>>, vector<1x32xf32>
    %12 = vector.broadcast %11 : vector<1x32xf32> to vector<8x32xf32>
    %13 = arith.addf %10, %12 : vector<8x32xf32>
    %cst_11 = arith.constant dense<0.000000e+00> : vector<8xf32>
    %14 = vector.multi_reduction <add>, %13, %cst_11 [1] : vector<8x32xf32> to vector<8xf32>
    %15 = vector.shape_cast %14 : vector<8xf32> to vector<8x1xf32>
    %16 = arith.mulf %13, %13 : vector<8x32xf32>
    %cst_12 = arith.constant dense<0.000000e+00> : vector<8xf32>
    %17 = vector.multi_reduction <add>, %16, %cst_12 [1] : vector<8x32xf32> to vector<8xf32>
    %18 = vector.shape_cast %17 : vector<8xf32> to vector<8x1xf32>
    %cst_13 = arith.constant 3.125000e-02 : f32
    %19 = vector.broadcast %cst_13 : f32 to vector<8x1xf32>
    %20 = arith.mulf %15, %19 : vector<8x1xf32>
    %cst_14 = arith.constant 3.125000e-02 : f32
    %21 = vector.broadcast %cst_14 : f32 to vector<8x1xf32>
    %22 = arith.mulf %18, %21 : vector<8x1xf32>
    %23 = arith.mulf %20, %20 : vector<8x1xf32>
    %24 = arith.subf %22, %23 : vector<8x1xf32>
    %25 = vector.broadcast %20 : vector<8x1xf32> to vector<8x32xf32>
    %26 = arith.subf %13, %25 : vector<8x32xf32>
    %cst_15 = arith.constant 9.99999974E-6 : f32
    %27 = vector.broadcast %cst_15 : f32 to vector<8x1xf32>
    %28 = arith.addf %24, %27 : vector<8x1xf32>
    %29 = math.rsqrt %28 : vector<8x1xf32>
    %30 = vector.broadcast %29 : vector<8x1xf32> to vector<8x32xf32>
    %31 = arith.mulf %26, %30 : vector<8x32xf32>
    %c0_16 = arith.constant 0 : index
    %c0_17 = arith.constant 0 : index
    %32 = vector.load %arg6[%c0_16, %c0_17] : memref<1x32xf32, #tpu.memory_space<vmem>>, vector<1x32xf32>
    %33 = vector.broadcast %32 : vector<1x32xf32> to vector<8x32xf32>
    %34 = arith.mulf %31, %33 : vector<8x32xf32>
    %c0_18 = arith.constant 0 : index
    %c0_19 = arith.constant 0 : index
    %35 = vector.load %arg7[%c0_18, %c0_19] : memref<1x32xf32, #tpu.memory_space<vmem>>, vector<1x32xf32>
    %36 = vector.broadcast %35 : vector<1x32xf32> to vector<8x32xf32>
    %37 = arith.addf %34, %36 : vector<8x32xf32>
    %38 = arith.truncf %37 : vector<8x32xf32> to vector<8x32xbf16>
    %c0_20 = arith.constant 0 : index
    %c0_21 = arith.constant 0 : index
    %39 = vector.load %arg8[%c0_20, %c0_21] : memref<32x256xbf16, #tpu.memory_space<vmem>>, vector<32x256xbf16>
    %cst_22 = arith.constant dense<0.000000e+00> : vector<8x256xf32>
    %40 = tpu.matmul %38, %39, %cst_22 {dimension_numbers = #tpu.dot_dimension_numbers<[1], [0], [0], [1], [0, 0, 1, 1], [], []>} : vector<8x32xbf16>, vector<32x256xbf16>, vector<8x256xf32> -> vector<8x256xf32>
    %c0_23 = arith.constant 0 : index
    %c0_24 = arith.constant 0 : index
    %41 = vector.load %arg9[%c0_23, %c0_24] : memref<8x256xf32, #tpu.memory_space<vmem>>, vector<8x256xf32>
    tpu.vector_store %arg9[%c0_23, %c0_24], %40 {strides = array<i32>} : memref<8x256xf32, #tpu.memory_space<vmem>>, vector<8x256xf32>,
    return
  }
  func.func @transform_0(%arg0: i32) -> (i32, i32) {
    %c0_i32 = arith.constant 0 : i32
    %c0_i32_0 = arith.constant 0 : i32
    %c0_i32_1 = arith.constant 0 : i32
    return %c0_i32, %c0_i32_0 : i32, i32
  }
  func.func @transform_1(%arg0: i32) -> (i32, i32) {
    %c0_i32 = arith.constant 0 : i32
    %c0_i32_0 = arith.constant 0 : i32
    %c0_i32_1 = arith.constant 0 : i32
    return %c0_i32, %c0_i32_0 : i32, i32
  }
  func.func @transform_2(%arg0: i32) -> (i32, i32) {
    %c0_i32 = arith.constant 0 : i32
    %c0_i32_0 = arith.constant 0 : i32
    %c0_i32_1 = arith.constant 0 : i32
    return %c0_i32, %c0_i32_0 : i32, i32
  }
  func.func @transform_3(%arg0: i32) -> (i32, i32) {
    %c0_i32 = arith.constant 0 : i32
    %c0_i32_0 = arith.constant 0 : i32
    %c0_i32_1 = arith.constant 0 : i32
    return %c0_i32, %c0_i32_0 : i32, i32
  }
  func.func @transform_4(%arg0: i32) -> (i32, i32) {
    %c0_i32 = arith.constant 0 : i32
    %c0_i32_0 = arith.constant 0 : i32
    %c0_i32_1 = arith.constant 0 : i32
    return %c0_i32, %c0_i32_0 : i32, i32
  }
  func.func @transform_5(%arg0: i32) -> (i32, i32) {
    %c0_i32 = arith.constant 0 : i32
    %c0_i32_0 = arith.constant 0 : i32
    %c0_i32_1 = arith.constant 0 : i32
    return %c0_i32, %c0_i32_0 : i32, i32
  }
  func.func @transform_6(%arg0: i32) -> (i32, i32) {
    %c0_i32 = arith.constant 0 : i32
    %c0_i32_0 = arith.constant 0 : i32
    %c0_i32_1 = arith.constant 0 : i32
    return %c0_i32, %c0_i32_0 : i32, i32
  }
  func.func @transform_7(%arg0: i32) -> (i32, i32) {
    %c0_i32 = arith.constant 0 : i32
    %c0_i32_0 = arith.constant 0 : i32
    return %c0_i32, %arg0 : i32, i32
  }
  func.func @transform_8(%arg0: i32) -> (i32, i32) {
    %c0_i32 = arith.constant 0 : i32
    %c0_i32_0 = arith.constant 0 : i32
    return %c0_i32, %arg0 : i32, i32
  }
}

</mosaic_0001>

<llo_original>
// kernel: tpu_custom_call.1
$region0: #{tpu_custom_call.1}
  #allocation0 [shape = 'u32[]', space=smem, size = 0x4, offset = 0x4, fixed_abs, tag = 'smem constant byte address 0x4 - core index']
  #allocation1 [shape = 'u32[144,128]{1,0:T(1,128)}', space=vmem, size = 0x12000, scoped, tag = 'internal scratch']
  %s0 = inlined_call_operand.vmem [shape: bf16[8,32], index: 0, kind: input, shape index: {}]
  %s1 = inlined_call_operand.vmem [shape: bf16[32,128], index: 1, kind: input, shape index: {}]
  %s2 = inlined_call_operand.vmem [shape: f32[1,128], index: 2, kind: input, shape index: {}]
  %s3 = inlined_call_operand.vmem [shape: bf16[128,32], index: 3, kind: input, shape index: {}]
  %s4 = inlined_call_operand.vmem [shape: f32[1,32], index: 4, kind: input, shape index: {}]
  %s5 = inlined_call_operand.vmem [shape: f32[1,32], index: 5, kind: input, shape index: {}]
  %s6 = inlined_call_operand.vmem [shape: f32[1,32], index: 6, kind: input, shape index: {}]
  %s7 = inlined_call_operand.vmem [shape: bf16[32,512], index: 7, kind: input, shape index: {}]
  %s8 = inlined_call_operand.hbm [shape: f32[8,512], index: 8, kind: output, shape index: {}]
  %s9 = sld [smem:[#allocation0]]
  $region103: #{tpu_custom_call.1} parent=0
    _
  %s11 = ssub.s32 1, %s9
  %s12 = scalar_select 0, %s11, %s9
  $region1: #{tpu_custom_call.1} parent=0
    #allocation2 [shape = 'u8[32768]{0}', space=vmem, size = 0x8000, scoped, tag = 'input window, operand 7']
    #allocation3 [shape = 'u8[16384]{0}', space=vmem, size = 0x4000, scoped, tag = 'output window, operand 0']
    #allocation4 [shape = 's32[2]{0}', space=sflag, size = 0x8, scoped, tag = 'scoped memory for tpu_custom_call.1']
    %13 = vsyncpa [#allocation4], 0
    %s14 = scalar_lea.sflag [#allocation4], 1
    %15 = vsyncpa %s14, 0
    loop: start=0, step=1, limit=4
    $region2: #{tpu_custom_call.1} parent=1 // loop_pre_header
      _
    $region3: #{tpu_custom_call.1} parent=1 // loop_header
      %s17 = sphi 0, %s21
      %p18 = scmp.ge.s32.totalorder %s17, 4
      %s25 = sphi 0, %s25
      %s27 = sphi 0, %s25
      %s28 = sphi 0, %s27
      %s42 = sphi 0, %s28
      %s46 = sphi 0, %s46
      %s48 = sphi 0, %s46
      %s49 = sphi 0, %s48
      %s63 = sphi 0, %s49
      %s67 = sphi 0, %s67
      %s69 = sphi 0, %s67
      %s70 = sphi 0, %s69
      %s84 = sphi 0, %s70
      %s88 = sphi 0, %s88
      %s90 = sphi 0, %s88
      %s91 = sphi 0, %s90
      %s105 = sphi 0, %s91
      %s109 = sphi 0, %s109
      %s111 = sphi 0, %s109
      %s112 = sphi 0, %s111
      %s126 = sphi 0, %s112
      %s130 = sphi 0, %s130
      %s132 = sphi 0, %s130
      %s133 = sphi 0, %s132
      %s147 = sphi 0, %s133
      %s151 = sphi 0, %s151
      %s153 = sphi 0, %s151
      %s154 = sphi 0, %s153
      %s168 = sphi 0, %s154
      %s174 = sphi 0, %s176
      %s177 = sphi 0, %s174
      %s178 = sphi 0, %s177
      %s194 = sphi 0, %s178
      %s200 = sphi 0, %s202
      %s203 = sphi 0, %s200
      %s204 = sphi 0, %s203
      %s220 = sphi 0, %s204
    $region4: #{tpu_custom_call.1} parent=1 // loop_header_branch
      %20 = sbr.rel (%p18) target = $region8
    $region5: #{tpu_custom_call.1} parent=1 // loop_body
      %s22 = ssub.s32 %s17, 1
      %s23 = ssub.s32 %s17, 2
      %s24 = sadd.s32 %s17, 1
      %s26 = sadd.s32 %s25, 1
      %p29 = scmp.eq.s32.totalorder %s17, 1
      %p30 = scmp.ne.s32.totalorder %s25, %s27
      %p31 = scmp.eq.s32.totalorder %s17, 0
      %p32 = por %p30, %p31
      %p33 = scmp.ne.s32.totalorder %s25, %s27
      %p34 = scmp.eq.s32.totalorder %s22, 1
      %p35 = por %p33, %p34
      %p36 = scmp.ne.s32.totalorder %s27, %s28
      %p37 = scmp.eq.s32.totalorder %s22, 0
      %p38 = por %p36, %p37
      %p39 = scmp.ne.s32.totalorder %s27, %s28
      %p40 = scmp.eq.s32.totalorder %s23, 1
      %p41 = por %p39, %p40
      %p43 = scmp.ne.s32.totalorder %s28, %s42
      %p44 = scmp.eq.s32.totalorder %s23, 0
      %p45 = por %p43, %p44
      %s47 = sadd.s32 %s46, 1
      %p50 = scmp.eq.s32.totalorder %s17, 1
      %p51 = scmp.ne.s32.totalorder %s46, %s48
      %p52 = scmp.eq.s32.totalorder %s17, 0
      %p53 = por %p51, %p52
      %p54 = scmp.ne.s32.totalorder %s46, %s48
      %p55 = scmp.eq.s32.totalorder %s22, 1
      %p56 = por %p54, %p55
      %p57 = scmp.ne.s32.totalorder %s48, %s49
      %p58 = scmp.eq.s32.totalorder %s22, 0
      %p59 = por %p57, %p58
      %p60 = scmp.ne.s32.totalorder %s48, %s49
      %p61 = scmp.eq.s32.totalorder %s23, 1
      %p62 = por %p60, %p61
      %p64 = scmp.ne.s32.totalorder %s49, %s63
      %p65 = scmp.eq.s32.totalorder %s23, 0
      %p66 = por %p64, %p65
      %s68 = sadd.s32 %s67, 1
      %p71 = scmp.eq.s32.totalorder %s17, 1
      %p72 = scmp.ne.s32.totalorder %s67, %s69
      %p73 = scmp.eq.s32.totalorder %s17, 0
      %p74 = por %p72, %p73
      %p75 = scmp.ne.s32.totalorder %s67, %s69
      %p76 = scmp.eq.s32.totalorder %s22, 1
      %p77 = por %p75, %p76
      %p78 = scmp.ne.s32.totalorder %s69, %s70
      %p79 = scmp.eq.s32.totalorder %s22, 0
      %p80 = por %p78, %p79
      %p81 = scmp.ne.s32.totalorder %s69, %s70
      %p82 = scmp.eq.s32.totalorder %s23, 1
      %p83 = por %p81, %p82
      %p85 = scmp.ne.s32.totalorder %s70, %s84
      %p86 = scmp.eq.s32.totalorder %s23, 0
      %p87 = por %p85, %p86
      %s89 = sadd.s32 %s88, 1
      %p92 = scmp.eq.s32.totalorder %s17, 1
      %p93 = scmp.ne.s32.totalorder %s88, %s90
      %p94 = scmp.eq.s32.totalorder %s17, 0
      %p95 = por %p93, %p94
      %p96 = scmp.ne.s32.totalorder %s88, %s90
      %p97 = scmp.eq.s32.totalorder %s22, 1
      %p98 = por %p96, %p97
      %p99 = scmp.ne.s32.totalorder %s90, %s91
      %p100 = scmp.eq.s32.totalorder %s22, 0
      %p101 = por %p99, %p100
      %p102 = scmp.ne.s32.totalorder %s90, %s91
      %p103 = scmp.eq.s32.totalorder %s23, 1
      %p104 = por %p102, %p103
      %p106 = scmp.ne.s32.totalorder %s91, %s105
      %p107 = scmp.eq.s32.totalorder %s23, 0
      %p108 = por %p106, %p107
      %s110 = sadd.s32 %s109, 1
      %p113 = scmp.eq.s32.totalorder %s17, 1
      %p114 = scmp.ne.s32.totalorder %s109, %s111
      %p115 = scmp.eq.s32.totalorder %s17, 0
      %p116 = por %p114, %p115
      %p117 = scmp.ne.s32.totalorder %s109, %s111
      %p118 = scmp.eq.s32.totalorder %s22, 1
      %p119 = por %p117, %p118
      %p120 = scmp.ne.s32.totalorder %s111, %s112
      %p121 = scmp.eq.s32.totalorder %s22, 0
      %p122 = por %p120, %p121
      %p123 = scmp.ne.s32.totalorder %s111, %s112
      %p124 = scmp.eq.s32.totalorder %s23, 1
      %p125 = por %p123, %p124
      %p127 = scmp.ne.s32.totalorder %s112, %s126
      %p128 = scmp.eq.s32.totalorder %s23, 0
      %p129 = por %p127, %p128
      %s131 = sadd.s32 %s130, 1
      %p134 = scmp.eq.s32.totalorder %s17, 1
      %p135 = scmp.ne.s32.totalorder %s130, %s132
      %p136 = scmp.eq.s32.totalorder %s17, 0
      %p137 = por %p135, %p136
      %p138 = scmp.ne.s32.totalorder %s130, %s132
      %p139 = scmp.eq.s32.totalorder %s22, 1
      %p140 = por %p138, %p139
      %p141 = scmp.ne.s32.totalorder %s132, %s133
      %p142 = scmp.eq.s32.totalorder %s22, 0
      %p143 = por %p141, %p142
      %p144 = scmp.ne.s32.totalorder %s132, %s133
      %p145 = scmp.eq.s32.totalorder %s23, 1
      %p146 = por %p144, %p145
      %p148 = scmp.ne.s32.totalorder %s133, %s147
      %p149 = scmp.eq.s32.totalorder %s23, 0
      %p150 = por %p148, %p149
      %s152 = sadd.s32 %s151, 1
      %p155 = scmp.eq.s32.totalorder %s17, 1
      %p156 = scmp.ne.s32.totalorder %s151, %s153
      %p157 = scmp.eq.s32.totalorder %s17, 0
      %p158 = por %p156, %p157
      %p159 = scmp.ne.s32.totalorder %s151, %s153
      %p160 = scmp.eq.s32.totalorder %s22, 1
      %p161 = por %p159, %p160
      %p162 = scmp.ne.s32.totalorder %s153, %s154
      %p163 = scmp.eq.s32.totalorder %s22, 0
      %p164 = por %p162, %p163
      %p165 = scmp.ne.s32.totalorder %s153, %s154
      %p166 = scmp.eq.s32.totalorder %s23, 1
      %p167 = por %p165, %p166
      %p169 = scmp.ne.s32.totalorder %s154, %s168
      %p170 = scmp.eq.s32.totalorder %s23, 0
      %p171 = por %p169, %p170
      %s172 = ssub.s32 %s17, %s24
      %p173 = scmp.eq.s32.totalorder %s172, 0
      %s175 = sadd.s32 %s174, 1
      %s176 = scalar_select %p173, %s174, %s175
      %p179 = pneg %p173
      %p180 = scmp.eq.s32.totalorder %s17, 1
      %p181 = por %p179, %p180
      %p182 = scmp.ne.s32.totalorder %s174, %s177
      %p183 = scmp.eq.s32.totalorder %s17, 0
      %p184 = por %p182, %p183
      %p185 = scmp.ne.s32.totalorder %s174, %s177
      %p186 = scmp.eq.s32.totalorder %s22, 1
      %p187 = por %p185, %p186
      %p188 = scmp.ne.s32.totalorder %s177, %s178
      %p189 = scmp.eq.s32.totalorder %s22, 0
      %p190 = por %p188, %p189
      %p191 = scmp.ne.s32.totalorder %s177, %s178
      %p192 = scmp.eq.s32.totalorder %s23, 1
      %p193 = por %p191, %p192
      %p195 = scmp.ne.s32.totalorder %s178, %s194
      %p196 = scmp.eq.s32.totalorder %s23, 0
      %p197 = por %p195, %p196
      %s198 = ssub.s32 %s17, %s24
      %p199 = scmp.eq.s32.totalorder %s198, 0
      %s201 = sadd.s32 %s200, 1
      %s202 = scalar_select %p199, %s200, %s201
      %p205 = pneg %p199
      %p206 = scmp.eq.s32.totalorder %s17, 1
      %p207 = por %p205, %p206
      %p208 = scmp.ne.s32.totalorder %s200, %s203
      %p209 = scmp.eq.s32.totalorder %s17, 0
      %p210 = por %p208, %p209
      %p211 = scmp.ne.s32.totalorder %s200, %s203
      %p212 = scmp.eq.s32.totalorder %s22, 1
      %p213 = por %p211, %p212
      %p214 = scmp.ne.s32.totalorder %s203, %s204
      %p215 = scmp.eq.s32.totalorder %s22, 0
      %p216 = por %p214, %p215
      %p217 = scmp.ne.s32.totalorder %s203, %s204
      %p218 = scmp.eq.s32.totalorder %s23, 1
      %p219 = por %p217, %p218
      %p221 = scmp.ne.s32.totalorder %s204, %s220
      %p222 = scmp.eq.s32.totalorder %s23, 0
      %p223 = por %p221, %p222
      %p224 = scmp.le.s32.totalorder 1, %s17
      %p225 = scmp.lt.s32.totalorder %s17, 3
      %p226 = pnand %p224, %p225
      %p227 = pneg %p226
      // Predicated region
      $region9: #{tpu_custom_call.1} parent=5 // pred_check
        _
      $region10: #{tpu_custom_call.1} parent=5 // pred_check_branch
        %229 = sbr.rel (%p226) target = $region12
      $region11: #{tpu_custom_call.1} parent=5 // pred_region
        %s230 = ssub.s32 %s17, 1
        // Predicated region
        $region13: #{tpu_custom_call.1} parent=11 // pred_check
          %p231 = pneg %p38
        $region14: #{tpu_custom_call.1} parent=11 // pred_check_branch
          %233 = sbr.rel (%p231) target = $region16
        $region15: #{tpu_custom_call.1} parent=11 // pred_region
          _
        $region16: #{tpu_custom_call.1} parent=11 // pred_fallthru
          _
        // Predicated region
        $region17: #{tpu_custom_call.1} parent=11 // pred_check
          %p234 = pneg %p59
        $region18: #{tpu_custom_call.1} parent=11 // pred_check_branch
          %236 = sbr.rel (%p234) target = $region20
        $region19: #{tpu_custom_call.1} parent=11 // pred_region
          _
        $region20: #{tpu_custom_call.1} parent=11 // pred_fallthru
          _
        // Predicated region
        $region21: #{tpu_custom_call.1} parent=11 // pred_check
          %p237 = pneg %p80
        $region22: #{tpu_custom_call.1} parent=11 // pred_check_branch
          %239 = sbr.rel (%p237) target = $region24
        $region23: #{tpu_custom_call.1} parent=11 // pred_region
          _
        $region24: #{tpu_custom_call.1} parent=11 // pred_fallthru
          _
        // Predicated region
        $region25: #{tpu_custom_call.1} parent=11 // pred_check
          %p240 = pneg %p101
        $region26: #{tpu_custom_call.1} parent=11 // pred_check_branch
          %242 = sbr.rel (%p240) target = $region28
        $region27: #{tpu_custom_call.1} parent=11 // pred_region
          _
        $region28: #{tpu_custom_call.1} parent=11 // pred_fallthru
          _
        // Predicated region
        $region29: #{tpu_custom_call.1} parent=11 // pred_check
          %p243 = pneg %p122
        $region30: #{tpu_custom_call.1} parent=11 // pred_check_branch
          %245 = sbr.rel (%p243) target = $region32
        $region31: #{tpu_custom_call.1} parent=11 // pred_region
          _
        $region32: #{tpu_custom_call.1} parent=11 // pred_fallthru
          _
        // Predicated region
        $region33: #{tpu_custom_call.1} parent=11 // pred_check
          %p246 = pneg %p143
        $region34: #{tpu_custom_call.1} parent=11 // pred_check_branch
          %248 = sbr.rel (%p246) target = $region36
        $region35: #{tpu_custom_call.1} parent=11 // pred_region
          _
        $region36: #{tpu_custom_call.1} parent=11 // pred_fallthru
          _
        // Predicated region
        $region37: #{tpu_custom_call.1} parent=11 // pred_check
          %p249 = pneg %p164
        $region38: #{tpu_custom_call.1} parent=11 // pred_check_branch
          %251 = sbr.rel (%p249) target = $region40
        $region39: #{tpu_custom_call.1} parent=11 // pred_region
          _
        $region40: #{tpu_custom_call.1} parent=11 // pred_fallthru
          _
      $region12: #{tpu_custom_call.1} parent=5 // pred_fallthru
        _
      %p252 = scmp.lt.s32.totalorder %s17, 2
      // Predicated region
      $region41: #{tpu_custom_call.1} parent=5 // pred_check
        %p253 = pneg %p252
      $region42: #{tpu_custom_call.1} parent=5 // pred_check_branch
        %255 = sbr.rel (%p253) target = $region44
      $region43: #{tpu_custom_call.1} parent=5 // pred_region
        // Predicated region
        $region45: #{tpu_custom_call.1} parent=43 // pred_check
          %p256 = pneg %p184
        $region46: #{tpu_custom_call.1} parent=43 // pred_check_branch
          %258 = sbr.rel (%p256) target = $region48
        $region47: #{tpu_custom_call.1} parent=43 // pred_region
          %s259 = sand.u32 %s174, 1
          %s260 = sand.u32 %s174, 1
          %s261 = smul.addr %s260, 32
          %s262 = scalar_lea.vmem [#allocation2], %s261
          %s263 = smul.u32 2, %s17
          %s264 = smul.addr %s263, 4
          %s265 = scalar_lea.vmem %s7, %s264
          // Predicated region
          $region49: #{tpu_custom_call.1} parent=47 // pred_check
            _
          $region50: #{tpu_custom_call.1} parent=47 // pred_check_branch
            %267 = sbr.rel (0) target = $region52
          $region51: #{tpu_custom_call.1} parent=47 // pred_region
            // Predicated region
            $region53: #{tpu_custom_call.1} parent=51 // pred_check
              _
            $region54: #{tpu_custom_call.1} parent=51 // pred_check_branch
              %269 = sbr.rel (0) target = $region56
            $region55: #{tpu_custom_call.1} parent=51 // pred_region
              // Predicated region
              $region68: #{tpu_custom_call.1} parent=55 // pred_check
                _
              $region69: #{tpu_custom_call.1} parent=55 // pred_check_branch
                %290 = sbr.rel (0) target = $region71
              $region70: #{tpu_custom_call.1} parent=55 // pred_region
                loop: start=0, step=1, limit=1
                $region72: #{tpu_custom_call.1} parent=70 // loop_pre_header
                  _
                $region73: #{tpu_custom_call.1} parent=70 // loop_header
                  %s292 = sphi 0, %s296
                  %p293 = scmp.ge.s32.totalorder %s292, 1
                  %s297 = sphi %s265, %s265
                  %s298 = sphi %s262, %s262
                $region74: #{tpu_custom_call.1} parent=70 // loop_header_branch
                  %295 = sbr.rel (%p293) target = $region78
                $region75: #{tpu_custom_call.1} parent=70 // loop_body
                  %v299 = vld [vmem:[%s297] sm:$0xff]
                  %300 = vst [vmem:[%s298] sm:$0xff] %v299
                  %v301 = vld [vmem:[%s297 + $0x10] sm:$0xff]
                  %302 = vst [vmem:[%s298 + $0x8] sm:$0xff] %v301
                  %v303 = vld [vmem:[%s297 + $0x20] sm:$0xff]
                  %304 = vst [vmem:[%s298 + $0x10] sm:$0xff] %v303
                  %v305 = vld [vmem:[%s297 + $0x30] sm:$0xff]
                  %306 = vst [vmem:[%s298 + $0x18] sm:$0xff] %v305
                $region76: #{tpu_custom_call.1} parent=70 // loop_footer
                  %s296 = sadd.s32 1, %s292
                $region77: #{tpu_custom_call.1} parent=70 // loop_footer_branch
                  %291 = sbr.rel target = $region73
                $region78: #{tpu_custom_call.1} parent=70 // loop_exit
                  _
              $region71: #{tpu_custom_call.1} parent=55 // pred_fallthru
                _
              // Predicated region
              $region79: #{tpu_custom_call.1} parent=55 // pred_check
                _
              $region80: #{tpu_custom_call.1} parent=55 // pred_check_branch
                %308 = sbr.rel target = $region82
              $region81: #{tpu_custom_call.1} parent=55 // pred_region
                _
              $region82: #{tpu_custom_call.1} parent=55 // pred_fallthru
                _
            $region56: #{tpu_custom_call.1} parent=51 // pred_fallthru
              _
            // Predicated region
            $region57: #{tpu_custom_call.1} parent=51 // pred_check
              _
            $region58: #{tpu_custom_call.1} parent=51 // pred_check_branch
              %271 = sbr.rel target = $region60
            $region59: #{tpu_custom_call.1} parent=51 // pred_region
              loop: start=0, step=1, limit=1
              $region61: #{tpu_custom_call.1} parent=59 // loop_pre_header
                _
              $region62: #{tpu_custom_call.1} parent=59 // loop_header
                %s274 = sphi 0, %s278
                %p275 = scmp.ge.s32.totalorder %s274, 1
                %s279 = sphi %s265, %s265
                %s280 = sphi %s262, %s262
              $region63: #{tpu_custom_call.1} parent=59 // loop_header_branch
                %277 = sbr.rel (%p275) target = $region67
              $region64: #{tpu_custom_call.1} parent=59 // loop_body
                %v281 = vld [vmem:[%s279] sm:$0xff]
                %282 = vst [vmem:[%s280] sm:$0xff] %v281
                %v283 = vld [vmem:[%s279 + $0x10] sm:$0xff]
                %284 = vst [vmem:[%s280 + $0x8] sm:$0xff] %v283
                %v285 = vld [vmem:[%s279 + $0x20] sm:$0xff]
                %286 = vst [vmem:[%s280 + $0x10] sm:$0xff] %v285
                %v287 = vld [vmem:[%s279 + $0x30] sm:$0xff]
                %288 = vst [vmem:[%s280 + $0x18] sm:$0xff] %v287
              $region65: #{tpu_custom_call.1} parent=59 // loop_footer
                %s278 = sadd.s32 1, %s274
              $region66: #{tpu_custom_call.1} parent=59 // loop_footer_branch
                %273 = sbr.rel target = $region62
              $region67: #{tpu_custom_call.1} parent=59 // loop_exit
                _
            $region60: #{tpu_custom_call.1} parent=51 // pred_fallthru
              _
          $region52: #{tpu_custom_call.1} parent=47 // pred_fallthru
            _
          %309 = vnop
        $region48: #{tpu_custom_call.1} parent=43 // pred_fallthru
          _
      $region44: #{tpu_custom_call.1} parent=5 // pred_fallthru
        _
      %p310 = scmp.le.s32.totalorder 1, %s17
      %p311 = scmp.lt.s32.totalorder %s17, 3
      %p312 = pnand %p310, %p311
      %p313 = pneg %p312
      // Predicated region
      $region83: #{tpu_custom_call.1} parent=5 // pred_check
        _
      $region84: #{tpu_custom_call.1} parent=5 // pred_check_branch
        %315 = sbr.rel (%p312) target = $region86
      $region85: #{tpu_custom_call.1} parent=5 // pred_region
        %s316 = ssub.s32 %s17, 1
        %s317 = sand.u32 %s177, 1
        %s318 = sand.u32 %s177, 1
        %s319 = smul.addr %s318, 32
        %s320 = scalar_lea.vmem [#allocation2], %s319
        // Predicated region
        $region87: #{tpu_custom_call.1} parent=85 // pred_check
          %p321 = pneg %p190
        $region88: #{tpu_custom_call.1} parent=85 // pred_check_branch
          %323 = sbr.rel (%p321) target = $region90
        $region89: #{tpu_custom_call.1} parent=85 // pred_region
          _
        $region90: #{tpu_custom_call.1} parent=85 // pred_fallthru
          _
        %p324 = pneg %p38
        %p325 = pneg %p35
        %p326 = pneg %p59
        %p327 = pneg %p56
        %p328 = pneg %p80
        %p329 = pneg %p77
        %p330 = pneg %p101
        %p331 = pneg %p98
        %p332 = pneg %p122
        %p333 = pneg %p119
        %p334 = pneg %p143
        %p335 = pneg %p140
        %p336 = pneg %p164
        %p337 = pneg %p161
        %s338 = sand.u32 %s177, 1
        %s339 = sand.u32 %s177, 1
        %s340 = smul.addr %s339, 32
        %s341 = scalar_lea.vmem [#allocation2], %s340
        %p342 = pneg %p190
        %p343 = pneg %p187
        %p344 = pneg %p216
        %p345 = pneg %p213
        %s346 = sand.u32 %s203, 1
        %s347 = scalar_lea.sflag [#allocation4], %s346
        %s348 = sand.u32 %s203, 1
        %s349 = smul.addr %s348, 16
        %s350 = scalar_lea.vmem [#allocation3], %s349
        %s351 = smul.u32 2, %s22
        %s352 = smul.u32 2, %s22
        %v354 = vld [vmem:[%s0] sm:$0xf]
        %v355 = vld [vmem:[%s1] sm:$0xf]
        %v356 = vld [vmem:[%s1 + $0x4] sm:$0xf]
        %v357 = vld [vmem:[%s1 + $0x8] sm:$0xf]
        %v358 = vld [vmem:[%s1 + $0xc] sm:$0xf]
        %v359 = vld [vmem:[%s2] sm:$0x1]
        %v361 = vlaneseq
        %v362 = vshrl.u32 %v361, 7
        %v363 = vsub.s32 0, %v362
        %v364 = vrot.slane %v359, %v363
        %v370 = vunpack.c.l.b16 %v355
        %v371 = vunpack.c.l.b16 %v356
        %v372 = vunpack.c.l.b16 %v357
        %v373 = vunpack.c.l.b16 %v358
        %v374 = vpack.c.b16 %v371, %v370
        %v375 = vpack.c.b16 %v373, %v372
        %vm378 = vcmask 261120
        %v380 = vsel %vm378, %v354, 0
        %382 = vmatprep.subr.bf16.mxu0 0
        %383 = vmatpush1.bf16.msra.mxu0 %v374
        %384 = vmatprep.subr.bf16.mxu0 0
        %385 = vmatpush1.bf16.msra.mxu0 %v375
        %386 = vmatprep.subr.bf16.mxu0 0
        %387 = vmatpush1.bf16.msra.mxu0 0
        %388 = vmatprep.subr.bf16.mxu0 0
        %389 = vmatpush1.bf16.msra.mxu0 0
        %390 = vmatprep.subr.bf16.mxu0 0
        %391 = vmatpush1.bf16.msra.mxu0 0
        %392 = vmatprep.subr.bf16.mxu0 0
        %393 = vmatpush1.bf16.msra.mxu0 0
        %394 = vmatprep.subr.bf16.mxu0 0
        %395 = vmatpush1.bf16.msra.mxu0 0
        %396 = vmatprep.subr.bf16.mxu0 0
        %397 = vmatpush1.bf16.msra.mxu0 0
        %398 = vmatprep.subr.bf16.mxu0 0
        %399 = vmatpush1.bf16.msra.mxu0 0
        %400 = vmatprep.subr.bf16.mxu0 0
        %401 = vmatpush1.bf16.msra.mxu0 0
        %402 = vmatprep.subr.bf16.mxu0 0
        %403 = vmatpush1.bf16.msra.mxu0 0
        %404 = vmatprep.subr.bf16.mxu0 0
        %405 = vmatpush1.bf16.msra.mxu0 0
        %406 = vmatprep.subr.bf16.mxu0 0
        %407 = vmatpush1.bf16.msra.mxu0 0
        %408 = vmatprep.subr.bf16.mxu0 0
        %409 = vmatpush1.bf16.msra.mxu0 0
        %410 = vmatprep.subr.bf16.mxu0 0
        %411 = vmatpush1.bf16.msra.mxu0 0
        %412 = vmatprep.subr.bf16.mxu0 0
        %413 = vmatpush1.bf16.msra.mxu0 0
        %414 = vmatprep.mubr.bf16.mxu0 0
        %415 = vmatmul.mubr.bf16.gmra.mrb[0].mxu0 %v380
        %v416 = vpop.f32.mrb[0].mxu0
        %v417 = vadd.f32 %v364, %v416
        %v418 = vpop.f32.mrb[0].mxu0
        %v419 = vpop.f32.mrb[0].mxu0
        %v420 = vpop.f32.mrb[0].mxu0
        %421 = vdwg.mxu0
        %v422 = vmax.f32 %v417, 0.0
        %v423 = vpack.c.bf16 %v422, %v422
        %v424 = vld [vmem:[%s3] sm:$0xf]
        %v425 = vld [vmem:[%s3 + $0x4] sm:$0xf]
        %v426 = vld [vmem:[%s3 + $0x8] sm:$0xf]
        %v427 = vld [vmem:[%s3 + $0xc] sm:$0xf]
        %v428 = vld [vmem:[%s3 + $0x10] sm:$0xf]
        %v429 = vld [vmem:[%s3 + $0x14] sm:$0xf]
        %v430 = vld [vmem:[%s3 + $0x18] sm:$0xf]
        %v431 = vld [vmem:[%s3 + $0x1c] sm:$0xf]
        %v432 = vld [vmem:[%s3 + $0x20] sm:$0xf]
        %v433 = vld [vmem:[%s3 + $0x24] sm:$0xf]
        %v434 = vld [vmem:[%s3 + $0x28] sm:$0xf]
        %v435 = vld [vmem:[%s3 + $0x2c] sm:$0xf]
        %v436 = vld [vmem:[%s3 + $0x30] sm:$0xf]
        %v437 = vld [vmem:[%s3 + $0x34] sm:$0xf]
        %v438 = vld [vmem:[%s3 + $0x38] sm:$0xf]
        %v439 = vld [vmem:[%s3 + $0x3c] sm:$0xf]
        %v440 = vld [vmem:[%s4] sm:$0x1]
        %v442 = vlaneseq
        %v443 = vshrl.u32 %v442, 7
        %v444 = vsub.s32 0, %v443
        %v445 = vrot.slane %v440, %v444
        %v463 = vunpack.c.l.b16 %v424
        %v464 = vunpack.c.l.b16 %v425
        %v465 = vunpack.c.l.b16 %v426
        %v466 = vunpack.c.l.b16 %v427
        %v467 = vunpack.c.l.b16 %v428
        %v468 = vunpack.c.l.b16 %v429
        %v469 = vunpack.c.l.b16 %v430
        %v470 = vunpack.c.l.b16 %v431
        %v471 = vunpack.c.l.b16 %v432
        %v472 = vunpack.c.l.b16 %v433
        %v473 = vunpack.c.l.b16 %v434
        %v474 = vunpack.c.l.b16 %v435
        %v475 = vunpack.c.l.b16 %v436
        %v476 = vunpack.c.l.b16 %v437
        %v477 = vunpack.c.l.b16 %v438
        %v478 = vunpack.c.l.b16 %v439
        %v479 = vpack.c.b16 %v464, %v463
        %v480 = vpack.c.b16 %v466, %v465
        %v481 = vpack.c.b16 %v468, %v467
        %v482 = vpack.c.b16 %v470, %v469
        %v483 = vpack.c.b16 %v472, %v471
        %v484 = vpack.c.b16 %v474, %v473
        %v485 = vpack.c.b16 %v476, %v475
        %v486 = vpack.c.b16 %v478, %v477
        %495 = vmatprep.subr.bf16.mxu0 0
        %496 = vmatpush1.bf16.msra.mxu0 %v479
        %497 = vmatprep.subr.bf16.mxu0 0
        %498 = vmatpush1.bf16.msra.mxu0 %v480
        %499 = vmatprep.subr.bf16.mxu0 0
        %500 = vmatpush1.bf16.msra.mxu0 %v481
        %501 = vmatprep.subr.bf16.mxu0 0
        %502 = vmatpush1.bf16.msra.mxu0 %v482
        %503 = vmatprep.subr.bf16.mxu0 0
        %504 = vmatpush1.bf16.msra.mxu0 %v483
        %505 = vmatprep.subr.bf16.mxu0 0
        %506 = vmatpush1.bf16.msra.mxu0 %v484
        %507 = vmatprep.subr.bf16.mxu0 0
        %508 = vmatpush1.bf16.msra.mxu0 %v485
        %509 = vmatprep.subr.bf16.mxu0 0
        %510 = vmatpush1.bf16.msra.mxu0 %v486
        %511 = vmatprep.subr.bf16.mxu0 0
        %512 = vmatpush1.bf16.msra.mxu0 0
        %513 = vmatprep.subr.bf16.mxu0 0
        %514 = vmatpush1.bf16.msra.mxu0 0
        %515 = vmatprep.subr.bf16.mxu0 0
        %516 = vmatpush1.bf16.msra.mxu0 0
        %517 = vmatprep.subr.bf16.mxu0 0
        %518 = vmatpush1.bf16.msra.mxu0 0
        %519 = vmatprep.subr.bf16.mxu0 0
        %520 = vmatpush1.bf16.msra.mxu0 0
        %521 = vmatprep.subr.bf16.mxu0 0
        %522 = vmatpush1.bf16.msra.mxu0 0
        %523 = vmatprep.subr.bf16.mxu0 0
        %524 = vmatpush1.bf16.msra.mxu0 0
        %525 = vmatprep.subr.bf16.mxu0 0
        %526 = vmatpush1.bf16.msra.mxu0 0
        %527 = vmatprep.mubr.bf16.mxu0 0
        %528 = vmatmul.mubr.bf16.gmra.mrb[0].mxu0 %v423
        %v529 = vpop.f32.mrb[0].mxu0
        %v530 = vadd.f32 %v445, %v529
        %v531 = vpop.f32.mrb[0].mxu0
        %v532 = vpop.f32.mrb[0].mxu0
        %v533 = vpop.f32.mrb[0].mxu0
        %534 = vdwg.mxu0
        %v535 = vsel %vm378, %v530, 0.0
        %536 = vadd.xlane.f32.xlu0 %v535
        %v537 = vpop.xlane.xlu0 %536
        %v538 = vmul.f32 %v530, %v530
        %v539 = vsel %vm378, %v538, 0.0
        %540 = vadd.xlane.f32.xlu0 %v539
        %v541 = vpop.xlane.xlu0 %540
        %v542 = vmul.f32 %v537, 0.03125
        %v543 = vmul.f32 %v541, 0.03125
        %v544 = vmul.f32 %v542, %v542
        %v545 = vsub.f32 %v543, %v544
        %v546 = vsub.f32 %v530, %v542
        %v547 = vadd.f32 %v545, 1e-05
        %v548 = vrsqrt.pop %v547
        %v549 = vmul.f32 %v546, %v548
        %v550 = vld [vmem:[%s5] sm:$0x1]
        %v552 = vlaneseq
        %v553 = vshrl.u32 %v552, 7
        %v554 = vsub.s32 0, %v553
        %v555 = vrot.slane %v550, %v554
        %v557 = vmul.f32 %v549, %v555
        %v558 = vld [vmem:[%s6] sm:$0x1]
        %v560 = vlaneseq
        %v561 = vshrl.u32 %v560, 7
        %v562 = vsub.s32 0, %v561
        %v563 = vrot.slane %v558, %v562
        %v565 = vadd.f32 %v557, %v563
        %v566 = vpack.c.bf16 %v565, %v565
        %v567 = vld [vmem:[%s320] sm:$0xff]
        %v568 = vld [vmem:[%s320 + $0x8] sm:$0xff]
        %v569 = vld [vmem:[%s320 + $0x10] sm:$0xff]
        %v570 = vld [vmem:[%s320 + $0x18] sm:$0xff]
        %v575 = vunpack.c.l.b16 %v567
        %v576 = vunpack.c.h.b16 %v567
        %v577 = vunpack.c.l.b16 %v568
        %v578 = vunpack.c.h.b16 %v568
        %v579 = vunpack.c.l.b16 %v569
        %v580 = vunpack.c.h.b16 %v569
        %v581 = vunpack.c.l.b16 %v570
        %v582 = vunpack.c.h.b16 %v570
        %v583 = vpack.c.b16 %v577, %v575
        %v584 = vpack.c.b16 %v578, %v576
        %v585 = vpack.c.b16 %v581, %v579
        %v586 = vpack.c.b16 %v582, %v580
        %v592 = vsel %vm378, %v566, 0
        %594 = vmatprep.subr.bf16.mxu0 %v584
        %595 = vmatpush1.bf16.msra.mxu0 %v583
        %596 = vmatprep.subr.bf16.mxu0 %v586
        %597 = vmatpush1.bf16.msra.mxu0 %v585
        %598 = vmatprep.subr.bf16.mxu0 0
        %599 = vmatpush1.bf16.msra.mxu0 0
        %600 = vmatprep.subr.bf16.mxu0 0
        %601 = vmatpush1.bf16.msra.mxu0 0
        %602 = vmatprep.subr.bf16.mxu0 0
        %603 = vmatpush1.bf16.msra.mxu0 0
        %604 = vmatprep.subr.bf16.mxu0 0
        %605 = vmatpush1.bf16.msra.mxu0 0
        %606 = vmatprep.subr.bf16.mxu0 0
        %607 = vmatpush1.bf16.msra.mxu0 0
        %608 = vmatprep.subr.bf16.mxu0 0
        %609 = vmatpush1.bf16.msra.mxu0 0
        %610 = vmatprep.subr.bf16.mxu0 0
        %611 = vmatpush1.bf16.msra.mxu0 0
        %612 = vmatprep.subr.bf16.mxu0 0
        %613 = vmatpush1.bf16.msra.mxu0 0
        %614 = vmatprep.subr.bf16.mxu0 0
        %615 = vmatpush1.bf16.msra.mxu0 0
        %616 = vmatprep.subr.bf16.mxu0 0
        %617 = vmatpush1.bf16.msra.mxu0 0
        %618 = vmatprep.subr.bf16.mxu0 0
        %619 = vmatpush1.bf16.msra.mxu0 0
        %620 = vmatprep.subr.bf16.mxu0 0
        %621 = vmatpush1.bf16.msra.mxu0 0
        %622 = vmatprep.subr.bf16.mxu0 0
        %623 = vmatpush1.bf16.msra.mxu0 0
        %624 = vmatprep.subr.bf16.mxu0 0
        %625 = vmatpush1.bf16.msra.mxu0 0
        %626 = vmatprep.mubr.bf16.mxu0 0
        %627 = vmatmul.mubr.bf16.gmra.mrb[0].mxu0 %v592
        %v628 = vpop.f32.mrb[0].mxu0
        %v629 = vadd.f32 0.0, %v628
        %v630 = vpop.f32.mrb[0].mxu0
        %v631 = vadd.f32 0.0, %v630
        %v632 = vpop.f32.mrb[0].mxu0
        %v633 = vpop.f32.mrb[0].mxu0
        %634 = vdwg.mxu0
        %635 = vst [vmem:[%s350] sm:$0xff] %v629
        %636 = vst [vmem:[%s350 + $0x8] sm:$0xff] %v631
        %s637 = sand.u32 %s203, 1
        %s638 = scalar_lea.sflag [#allocation4], %s637
        %s639 = sand.u32 %s203, 1
        %s640 = smul.addr %s639, 16
        %s641 = scalar_lea.vmem [#allocation3], %s640
        // Predicated region
        $region91: #{tpu_custom_call.1} parent=85 // pred_check
          %p642 = pneg %p213
        $region92: #{tpu_custom_call.1} parent=85 // pred_check_branch
          %644 = sbr.rel (%p642) target = $region94
        $region93: #{tpu_custom_call.1} parent=85 // pred_region
          %s645 = smul.u32 2, %s22
          %s647 = ssub.s32 256, 256
          %648 = vsyncadd %s638, %s647
          %s649 = smul.addr %s645, 128
          %s650 = scalar_lea.hbm %s8, %s649
          %s652 = sshll.u32 %s641, 4
          %s653 = int_to_ptr.vmem [resolvable:$true] %s652
          %655 = dma.vmem_to_hbm [thread:$0]  %s653, 256, %s650, %s638
        $region94: #{tpu_custom_call.1} parent=85 // pred_fallthru
          _
      $region86: #{tpu_custom_call.1} parent=5 // pred_fallthru
        _
      %p656 = scmp.le.s32.totalorder 2, %s17
      // Predicated region
      $region95: #{tpu_custom_call.1} parent=5 // pred_check
        %p657 = pneg %p656
      $region96: #{tpu_custom_call.1} parent=5 // pred_check_branch
        %659 = sbr.rel (%p657) target = $region98
      $region97: #{tpu_custom_call.1} parent=5 // pred_region
        %s660 = ssub.s32 %s17, 2
        // Predicated region
        $region99: #{tpu_custom_call.1} parent=97 // pred_check
          %p661 = pneg %p219
        $region100: #{tpu_custom_call.1} parent=97 // pred_check_branch
          %663 = sbr.rel (%p661) target = $region102
        $region101: #{tpu_custom_call.1} parent=97 // pred_region
          %s664 = sand.u32 %s204, 1
          %s665 = scalar_lea.sflag [#allocation4], %s664
          %s666 = sand.u32 %s204, 1
          %s667 = smul.addr %s666, 16
          %s668 = scalar_lea.vmem [#allocation3], %s667
          %669 = dma.done %s665, 256
        $region102: #{tpu_custom_call.1} parent=97 // pred_fallthru
          _
      $region98: #{tpu_custom_call.1} parent=5 // pred_fallthru
        _
    $region6: #{tpu_custom_call.1} parent=1 // loop_footer
      %s21 = sadd.s32 1, %s17
    $region7: #{tpu_custom_call.1} parent=1 // loop_footer_branch
      %16 = sbr.rel target = $region3
    $region8: #{tpu_custom_call.1} parent=1 // loop_exit
      _
    %670 = vsyncpa [#allocation4], 1
    %s671 = scalar_lea.sflag [#allocation4], 1
    %672 = vsyncpa %s671, 1

</llo_original>
